<compile_context>
chip_gen: v7x
topology: tpu7x:2x2x1
jax: 0.10.0
libtpu: 0.0.40
codegen_flags: <defaults>
</compile_context>

<pallas_src>
import functools

import jax
import jax.numpy as jnp
import numpy as np
from jax.experimental import pallas as pl
from jax.experimental.pallas import tpu as pltpu

N_CLASSES = 11
SMOOTH = 1e-5
DEFAULT_WEIGHT = (0.5, 1.5, 1, 2, 2, 1, 2, 1, 1, 3, 2)


def _dice_partials_kernel(x_ref, t_ref, inter_ref, ysum_ref, zsum_ref,
                          *, n_classes, hw, t_pix):
    pj = pl.program_id(1)           # pixel-tile index (reduction axis)

    @pl.when(pj == 0)
    def _():
        inter_ref[...] = jnp.zeros_like(inter_ref)
        ysum_ref[...] = jnp.zeros_like(ysum_ref)
        zsum_ref[...] = jnp.zeros_like(zsum_ref)

    x = x_ref[...].astype(jnp.float32)      # (C, t_pix) logits (bf16/f32 in HBM)
    t = t_ref[...].astype(jnp.int32)        # (1, t_pix) labels (native dtype)

    # Softmax over the class (sublane) axis; reciprocal goes to the EUP.
    m = jnp.max(x, axis=0, keepdims=True)               # (1, t_pix)
    e = jnp.exp(x - m)                                   # (C, t_pix)
    p = e * pl.reciprocal(jnp.sum(e, axis=0, keepdims=True), approx=True)

    # One-hot labels: classes on sublanes, pixels on lanes.
    cls = jax.lax.broadcasted_iota(jnp.int32, (n_classes, t_pix), 0)
    oh = (t == cls).astype(jnp.float32)                  # (C, t_pix)

    # Mask only the remainder tile's p/oh (pre-softmax masking is redundant:
    # the selects below discard any NaN/Inf produced in garbage columns).
    if (hw % t_pix) != 0:            # static: emitted only if a remainder exists
        lane = jax.lax.broadcasted_iota(jnp.int32, (1, t_pix), 1)
        valid = (pj * t_pix + lane) < hw                 # (1, t_pix)
        p = jnp.where(valid, p, 0.0)
        oh = jnp.where(valid, oh, 0.0)

    # Per-step pixel-axis reduction into narrow (C, 1) output-resident
    # accumulators: VPU tree adds + one cheap XLU cross-lane reduce per array.
    inter_ref[...] += jnp.sum(p * oh, axis=-1, keepdims=True)
    ysum_ref[...] += jnp.sum(oh, axis=-1, keepdims=True)      # oh * oh == oh
    zsum_ref[...] += jnp.sum(p * p, axis=-1, keepdims=True)


def _pick_pixel_tile(hw, t_max):
    """Largest legal pixel tile; prefer an exact multiple-of-128 divisor of hw
    (kills the remainder mask) as long as it stays within 2x of t_max."""
    if hw <= t_max:
        return hw                    # full extent is always a legal block size
    t_max = max(128, (t_max // 128) * 128)
    cand = t_max
    while cand >= max(128, t_max // 2):
        if hw % cand == 0:
            return cand
        cand -= 128
    return t_max


def dice_loss(inputs, target, weight=DEFAULT_WEIGHT, *,
              n_classes=N_CLASSES, max_pixel_tile=32768):
    """inputs: (B, C, H, W) float logits (f32 or bf16); target: (B, H, W) ints."""
    B, C, H, W = inputs.shape
    assert C == n_classes
    HW = H * W

    # Free reshapes: no transpose, no dtype cast, no extra HBM pass.
    x = inputs.reshape(B, C, HW)
    t = target.reshape(B, 1, HW)

    t_pix = _pick_pixel_tile(HW, max_pixel_tile)
    n_tiles = pl.cdiv(HW, t_pix)

    kernel = functools.partial(_dice_partials_kernel, n_classes=n_classes,
                               hw=HW, t_pix=t_pix)

    part_shape = jax.ShapeDtypeStruct((B, n_classes, 1), jnp.float32)
    part_spec = pl.BlockSpec((None, n_classes, 1), lambda b, i: (b, 0, 0))

    # TODO(synk): for B == 1 on v7x add an explicit pixel-range core split
    # (leading size-2 "parallel" axis with per-core partial outputs); with
    # B >= 2 the "parallel" batch axis already uses both TensorCores.
    inter, ysum, zsum = pl.pallas_call(
        kernel,
        out_shape=(part_shape, part_shape, part_shape),
        grid_spec=pltpu.PrefetchScalarGridSpec(
            num_scalar_prefetch=0,
            grid=(B, n_tiles),
            in_specs=[
                pl.BlockSpec((None, n_classes, t_pix), lambda b, i: (b, 0, i)),
                pl.BlockSpec((None, 1, t_pix), lambda b, i: (b, 0, i)),
            ],
            out_specs=[part_spec, part_spec, part_spec],
        ),
        compiler_params=pltpu.CompilerParams(
            dimension_semantics=("parallel", "arbitrary"),
            vmem_limit_bytes=48 * 1024 * 1024,
        ),
    )(x, t)

    # Tiny epilogue in plain JAX: combine per-batch partials, dice, weights.
    inter = jnp.sum(inter[..., 0], axis=0)               # (C,)
    ysum = jnp.sum(ysum[..., 0], axis=0)                 # (C,)
    zsum = jnp.sum(zsum[..., 0], axis=0)                 # (C,)
    dice = 1.0 - (2.0 * inter + SMOOTH) / (zsum + ysum + SMOOTH)
    w = jnp.asarray(weight, dtype=jnp.float32)
    return jnp.sum(dice * w) / n_classes


def _reference_dice_loss(inputs, target, weight=DEFAULT_WEIGHT, n_classes=N_CLASSES):
    p = jax.nn.softmax(inputs.astype(jnp.float32), axis=1)            # (B,C,H,W)
    oh = jax.nn.one_hot(target, n_classes, axis=1, dtype=jnp.float32)
    loss = 0.0
    for i in range(n_classes):
        s, t = p[:, i], oh[:, i]
        inter = jnp.sum(s * t)
        ys = jnp.sum(t * t)
        zs = jnp.sum(s * s)
        dice = 1.0 - (2 * inter + SMOOTH) / (zs + ys + SMOOTH)
        loss = loss + dice * weight[i]
    return loss / n_classes


if __name__ == "__main__":
    key = jax.random.PRNGKey(0)
    k1, k2 = jax.random.split(key)
    B, C, H, W = 2, N_CLASSES, 16, 16
    inputs = jax.random.normal(k1, (B, C, H, W), dtype=jnp.float32)
    target = jax.random.randint(k2, (B, H, W), 0, N_CLASSES, dtype=jnp.int32)

    loss = dice_loss(inputs, target)
    jax.block_until_ready(loss)

    ref = _reference_dice_loss(inputs, target)
    np.testing.assert_allclose(np.asarray(loss), np.asarray(ref),
                               rtol=1e-3, atol=1e-5)
    print("KERNEL_OK")
</pallas_src>

<mosaic_0001>
module attributes {stable_mosaic.version = 11 : i64} {
  func.func @_dice_partials_kernel(%arg0: i32, %arg1: i32, %arg2: memref<1x11x256xf32, #tpu.memory_space<vmem>>, %arg3: memref<1x1x256xi32, #tpu.memory_space<vmem>>, %arg4: memref<1x11x1xf32, #tpu.memory_space<vmem>>, %arg5: memref<1x11x1xf32, #tpu.memory_space<vmem>>, %arg6: memref<1x11x1xf32, #tpu.memory_space<vmem>>) attributes {dimension_semantics = [#tpu.dimension_semantics<parallel>, #tpu.dimension_semantics<arbitrary>], iteration_bounds = array<i64: 2, 1>, scalar_prefetch = 0 : i64, scratch_operands = 0 : i64, tpu.core_type = #tpu.core_type<tc>, window_params = [{transform_indices = @transform_0, window_bounds = array<i64: 1, 11, 256>}, {transform_indices = @transform_1, window_bounds = array<i64: 1, 1, 256>}, {transform_indices = @transform_2, window_bounds = array<i64: 1, 11, 1>}, {transform_indices = @transform_3, window_bounds = array<i64: 1, 11, 1>}, {transform_indices = @transform_4, window_bounds = array<i64: 1, 11, 1>}]} {
    %c0_i32 = arith.constant 0 : i32
    %0 = arith.cmpi eq, %arg1, %c0_i32 : i32
    %1 = arith.extui %0 : i1 to i32
    %c0_i32_0 = arith.constant 0 : i32
    %2 = arith.cmpi ne, %1, %c0_i32_0 : i32
    scf.if %2 {
      %cst_28 = arith.constant 0.000000e+00 : f32
      %48 = vector.broadcast %cst_28 : f32 to vector<11x1xf32>
      %c0_29 = arith.constant 0 : index
      %c0_30 = arith.constant 0 : index
      %c0_31 = arith.constant 0 : index
      %49 = vector.load %arg4[%c0_29, %c0_30, %c0_31] : memref<1x11x1xf32, #tpu.memory_space<vmem>>, vector<1x11x1xf32>
      %50 = vector.shape_cast %49 : vector<1x11x1xf32> to vector<11x1xf32>
      %51 = vector.shape_cast %48 : vector<11x1xf32> to vector<1x11x1xf32>
      tpu.vector_store %arg4[%c0_29, %c0_30, %c0_31], %51 {strides = array<i32>} : memref<1x11x1xf32, #tpu.memory_space<vmem>>, vector<1x11x1xf32>,
      %cst_32 = arith.constant 0.000000e+00 : f32
      %52 = vector.broadcast %cst_32 : f32 to vector<11x1xf32>
      %c0_33 = arith.constant 0 : index
      %c0_34 = arith.constant 0 : index
      %c0_35 = arith.constant 0 : index
      %53 = vector.load %arg5[%c0_33, %c0_34, %c0_35] : memref<1x11x1xf32, #tpu.memory_space<vmem>>, vector<1x11x1xf32>
      %54 = vector.shape_cast %53 : vector<1x11x1xf32> to vector<11x1xf32>
      %55 = vector.shape_cast %52 : vector<11x1xf32> to vector<1x11x1xf32>
      tpu.vector_store %arg5[%c0_33, %c0_34, %c0_35], %55 {strides = array<i32>} : memref<1x11x1xf32, #tpu.memory_space<vmem>>, vector<1x11x1xf32>,
      %cst_36 = arith.constant 0.000000e+00 : f32
      %56 = vector.broadcast %cst_36 : f32 to vector<11x1xf32>
      %c0_37 = arith.constant 0 : index
      %c0_38 = arith.constant 0 : index
      %c0_39 = arith.constant 0 : index
      %57 = vector.load %arg6[%c0_37, %c0_38, %c0_39] : memref<1x11x1xf32, #tpu.memory_space<vmem>>, vector<1x11x1xf32>
      %58 = vector.shape_cast %57 : vector<1x11x1xf32> to vector<11x1xf32>
      %59 = vector.shape_cast %56 : vector<11x1xf32> to vector<1x11x1xf32>
      tpu.vector_store %arg6[%c0_37, %c0_38, %c0_39], %59 {strides = array<i32>} : memref<1x11x1xf32, #tpu.memory_space<vmem>>, vector<1x11x1xf32>,
    } else {
    }
    %c0 = arith.constant 0 : index
    %c0_1 = arith.constant 0 : index
    %c0_2 = arith.constant 0 : index
    %3 = vector.load %arg2[%c0, %c0_1, %c0_2] : memref<1x11x256xf32, #tpu.memory_space<vmem>>, vector<1x11x256xf32>
    %4 = vector.shape_cast %3 : vector<1x11x256xf32> to vector<11x256xf32>
    %c0_3 = arith.constant 0 : index
    %c0_4 = arith.constant 0 : index
    %c0_5 = arith.constant 0 : index
    %5 = vector.load %arg3[%c0_3, %c0_4, %c0_5] : memref<1x1x256xi32, #tpu.memory_space<vmem>>, vector<1x1x256xi32>
    %6 = vector.shape_cast %5 : vector<1x1x256xi32> to vector<1x256xi32>
    %cst = arith.constant dense<0xFF800000> : vector<256xf32>
    %7 = vector.multi_reduction <maximumf>, %4, %cst [0] : vector<11x256xf32> to vector<256xf32>
    %8 = vector.shape_cast %7 : vector<256xf32> to vector<1x256xf32>
    %9 = vector.broadcast %8 : vector<1x256xf32> to vector<11x256xf32>
    %10 = arith.subf %4, %9 : vector<11x256xf32>
    %11 = math.exp %10 : vector<11x256xf32>
    %cst_6 = arith.constant dense<0.000000e+00> : vector<256xf32>
    %12 = vector.multi_reduction <add>, %11, %cst_6 [0] : vector<11x256xf32> to vector<256xf32>
    %13 = vector.shape_cast %12 : vector<256xf32> to vector<1x256xf32>
    %14 = tpu.reciprocal %13 {approx = true} : vector<1x256xf32> -> vector<1x256xf32>
    %15 = vector.broadcast %14 : vector<1x256xf32> to vector<11x256xf32>
    %16 = arith.mulf %11, %15 : vector<11x256xf32>
    %17 = tpu.iota {dimensions = array<i32: 0>} : vector<11x256xi32>
    %18 = vector.broadcast %6 : vector<1x256xi32> to vector<11x256xi32>
    %19 = arith.cmpi eq, %18, %17 : vector<11x256xi32>
    %20 = arith.extui %19 : vector<11x256xi1> to vector<11x256xi32>
    %21 = arith.sitofp %20 : vector<11x256xi32> to vector<11x256xf32>
    %c0_7 = arith.constant 0 : index
    %c0_8 = arith.constant 0 : index
    %c0_9 = arith.constant 0 : index
    %22 = vector.load %arg4[%c0_7, %c0_8, %c0_9] : memref<1x11x1xf32, #tpu.memory_space<vmem>>, vector<1x11x1xf32>
    %23 = vector.shape_cast %22 : vector<1x11x1xf32> to vector<11x1xf32>
    %24 = arith.mulf %16, %21 : vector<11x256xf32>
    %cst_10 = arith.constant dense<0.000000e+00> : vector<11xf32>
    %25 = vector.multi_reduction <add>, %24, %cst_10 [1] : vector<11x256xf32> to vector<11xf32>
    %26 = vector.shape_cast %25 : vector<11xf32> to vector<11x1xf32>
    %27 = arith.addf %23, %26 : vector<11x1xf32>
    %c0_11 = arith.constant 0 : index
    %c0_12 = arith.constant 0 : index
    %c0_13 = arith.constant 0 : index
    %28 = vector.load %arg4[%c0_11, %c0_12, %c0_13] : memref<1x11x1xf32, #tpu.memory_space<vmem>>, vector<1x11x1xf32>
    %29 = vector.shape_cast %28 : vector<1x11x1xf32> to vector<11x1xf32>
    %30 = vector.shape_cast %27 : vector<11x1xf32> to vector<1x11x1xf32>
    tpu.vector_store %arg4[%c0_11, %c0_12, %c0_13], %30 {strides = array<i32>} : memref<1x11x1xf32, #tpu.memory_space<vmem>>, vector<1x11x1xf32>,
    %c0_14 = arith.constant 0 : index
    %c0_15 = arith.constant 0 : index
    %c0_16 = arith.constant 0 : index
    %31 = vector.load %arg5[%c0_14, %c0_15, %c0_16] : memref<1x11x1xf32, #tpu.memory_space<vmem>>, vector<1x11x1xf32>
    %32 = vector.shape_cast %31 : vector<1x11x1xf32> to vector<11x1xf32>
    %cst_17 = arith.constant dense<0.000000e+00> : vector<11xf32>
    %33 = vector.multi_reduction <add>, %21, %cst_17 [1] : vector<11x256xf32> to vector<11xf32>
    %34 = vector.shape_cast %33 : vector<11xf32> to vector<11x1xf32>
    %35 = arith.addf %32, %34 : vector<11x1xf32>
    %c0_18 = arith.constant 0 : index
    %c0_19 = arith.constant 0 : index
    %c0_20 = arith.constant 0 : index
    %36 = vector.load %arg5[%c0_18, %c0_19, %c0_20] : memref<1x11x1xf32, #tpu.memory_space<vmem>>, vector<1x11x1xf32>
    %37 = vector.shape_cast %36 : vector<1x11x1xf32> to vector<11x1xf32>
    %38 = vector.shape_cast %35 : vector<11x1xf32> to vector<1x11x1xf32>
    tpu.vector_store %arg5[%c0_18, %c0_19, %c0_20], %38 {strides = array<i32>} : memref<1x11x1xf32, #tpu.memory_space<vmem>>, vector<1x11x1xf32>,
    %c0_21 = arith.constant 0 : index
    %c0_22 = arith.constant 0 : index
    %c0_23 = arith.constant 0 : index
    %39 = vector.load %arg6[%c0_21, %c0_22, %c0_23] : memref<1x11x1xf32, #tpu.memory_space<vmem>>, vector<1x11x1xf32>
    %40 = vector.shape_cast %39 : vector<1x11x1xf32> to vector<11x1xf32>
    %41 = arith.mulf %16, %16 : vector<11x256xf32>
    %cst_24 = arith.constant dense<0.000000e+00> : vector<11xf32>
    %42 = vector.multi_reduction <add>, %41, %cst_24 [1] : vector<11x256xf32> to vector<11xf32>
    %43 = vector.shape_cast %42 : vector<11xf32> to vector<11x1xf32>
    %44 = arith.addf %40, %43 : vector<11x1xf32>
    %c0_25 = arith.constant 0 : index
    %c0_26 = arith.constant 0 : index
    %c0_27 = arith.constant 0 : index
    %45 = vector.load %arg6[%c0_25, %c0_26, %c0_27] : memref<1x11x1xf32, #tpu.memory_space<vmem>>, vector<1x11x1xf32>
    %46 = vector.shape_cast %45 : vector<1x11x1xf32> to vector<11x1xf32>
    %47 = vector.shape_cast %44 : vector<11x1xf32> to vector<1x11x1xf32>
    tpu.vector_store %arg6[%c0_25, %c0_26, %c0_27], %47 {strides = array<i32>} : memref<1x11x1xf32, #tpu.memory_space<vmem>>, vector<1x11x1xf32>,
    return
  }
  func.func @transform_0(%arg0: i32, %arg1: i32) -> (i32, i32, i32) {
    %c0_i32 = arith.constant 0 : i32
    %c0_i32_0 = arith.constant 0 : i32
    return %arg0, %c0_i32, %arg1 : i32, i32, i32
  }
  func.func @transform_1(%arg0: i32, %arg1: i32) -> (i32, i32, i32) {
    %c0_i32 = arith.constant 0 : i32
    %c0_i32_0 = arith.constant 0 : i32
    return %arg0, %c0_i32, %arg1 : i32, i32, i32
  }
  func.func @transform_2(%arg0: i32, %arg1: i32) -> (i32, i32, i32) {
    %c0_i32 = arith.constant 0 : i32
    %c0_i32_0 = arith.constant 0 : i32
    %c0_i32_1 = arith.constant 0 : i32
    return %arg0, %c0_i32, %c0_i32_0 : i32, i32, i32
  }
  func.func @transform_3(%arg0: i32, %arg1: i32) -> (i32, i32, i32) {
    %c0_i32 = arith.constant 0 : i32
    %c0_i32_0 = arith.constant 0 : i32
    %c0_i32_1 = arith.constant 0 : i32
    return %arg0, %c0_i32, %c0_i32_0 : i32, i32, i32
  }
  func.func @transform_4(%arg0: i32, %arg1: i32) -> (i32, i32, i32) {
    %c0_i32 = arith.constant 0 : i32
    %c0_i32_0 = arith.constant 0 : i32
    %c0_i32_1 = arith.constant 0 : i32
    return %arg0, %c0_i32, %c0_i32_0 : i32, i32, i32
  }
}

</mosaic_0001>

<llo_original>
// kernel: tpu_custom_call.1
$region0: #{tpu_custom_call.1}
  #allocation0 [shape = 'u32[]', space=smem, size = 0x4, offset = 0x4, fixed_abs, tag = 'smem constant byte address 0x4 - core index']
  #allocation1 [shape = 'u32[144,128]{1,0:T(1,128)}', space=vmem, size = 0x12000, scoped, tag = 'internal scratch']
  %s0 = inlined_call_operand.vmem [shape: f32[2,11,256], index: 0, kind: input, shape index: {}]
  %s1 = inlined_call_operand.vmem [shape: s32[2,1,256], index: 1, kind: input, shape index: {}]
  %s2 = inlined_call_operand.vmem [shape: f32[2,11,1], index: 2, kind: output, shape index: {0}]
  %s3 = inlined_call_operand.vmem [shape: f32[2,11,1], index: 3, kind: output, shape index: {1}]
  %s4 = inlined_call_operand.vmem [shape: f32[2,11,1], index: 4, kind: output, shape index: {2}]
  %5 = xla_tuple %s2, %s3, %s4
  %s6 = sld [smem:[#allocation0]]
  $region61: #{tpu_custom_call.1} parent=0
    _
  %s8 = ssub.s32 1, %s6
  %s9 = scalar_select 0, %s8, %s6
  loop: start=0, step=1, limit=4
  $region2: #{tpu_custom_call.1} parent=0 // loop_pre_header
    _
  $region3: #{tpu_custom_call.1} parent=0 // loop_header
    %s11 = sphi 0, %s15
    %p12 = scmp.ge.s32.totalorder %s11, 4
    %s18 = sphi 0, %s30
    %s19 = sphi 0, %s26
    %s20 = sphi 0, %s18
    %s21 = sphi 0, %s19
    %s22 = sphi 0, %s20
    %s23 = sphi 0, %s21
    %s35 = sphi 0, %s37
    %s38 = sphi 0, %s35
    %s39 = sphi 0, %s38
    %s55 = sphi 0, %s39
    %s63 = sphi 0, %s65
    %s66 = sphi 0, %s63
    %s67 = sphi 0, %s66
    %s83 = sphi 0, %s67
    %s89 = sphi 0, %s91
    %s92 = sphi 0, %s89
    %s93 = sphi 0, %s92
    %s109 = sphi 0, %s93
    %s115 = sphi 0, %s117
    %s118 = sphi 0, %s115
    %s119 = sphi 0, %s118
    %s135 = sphi 0, %s119
    %s141 = sphi 0, %s143
    %s144 = sphi 0, %s141
    %s145 = sphi 0, %s144
    %s161 = sphi 0, %s145
  $region4: #{tpu_custom_call.1} parent=0 // loop_header_branch
    %14 = sbr.rel (%p12) target = $region8
  $region5: #{tpu_custom_call.1} parent=0 // loop_body
    %s16 = ssub.s32 %s11, 1
    %s17 = ssub.s32 %s11, 2
    %s24 = sadd.s32 1, %s19
    %p25 = scmp.ge.s32.totalorder %s24, 1
    %s26 = scalar_select %p25, 0, %s24
    %s27 = sadd.s32 1, %s18
    %s28 = scalar_select %p25, %s27, %s18
    %p29 = scmp.ge.s32.totalorder %s28, 2
    %s30 = scalar_select %p29, 0, %s28
    %s31 = ssub.s32 %s18, %s30
    %s32 = ssub.s32 %s19, %s26
    %s33 = sor.u32 %s31, %s32
    %p34 = scmp.eq.s32.totalorder %s33, 0
    %s36 = sadd.s32 %s35, 1
    %s37 = scalar_select %p34, %s35, %s36
    %p40 = pneg %p34
    %p41 = scmp.eq.s32.totalorder %s11, 1
    %p42 = por %p40, %p41
    %p43 = scmp.ne.s32.totalorder %s35, %s38
    %p44 = scmp.eq.s32.totalorder %s11, 0
    %p45 = por %p43, %p44
    %p46 = scmp.ne.s32.totalorder %s35, %s38
    %p47 = scmp.eq.s32.totalorder %s16, 1
    %p48 = por %p46, %p47
    %p49 = scmp.ne.s32.totalorder %s38, %s39
    %p50 = scmp.eq.s32.totalorder %s16, 0
    %p51 = por %p49, %p50
    %p52 = scmp.ne.s32.totalorder %s38, %s39
    %p53 = scmp.eq.s32.totalorder %s17, 1
    %p54 = por %p52, %p53
    %p56 = scmp.ne.s32.totalorder %s39, %s55
    %p57 = scmp.eq.s32.totalorder %s17, 0
    %p58 = por %p56, %p57
    %s59 = ssub.s32 %s18, %s30
    %s60 = ssub.s32 %s19, %s26
    %s61 = sor.u32 %s59, %s60
    %p62 = scmp.eq.s32.totalorder %s61, 0
    %s64 = sadd.s32 %s63, 1
    %s65 = scalar_select %p62, %s63, %s64
    %p68 = pneg %p62
    %p69 = scmp.eq.s32.totalorder %s11, 1
    %p70 = por %p68, %p69
    %p71 = scmp.ne.s32.totalorder %s63, %s66
    %p72 = scmp.eq.s32.totalorder %s11, 0
    %p73 = por %p71, %p72
    %p74 = scmp.ne.s32.totalorder %s63, %s66
    %p75 = scmp.eq.s32.totalorder %s16, 1
    %p76 = por %p74, %p75
    %p77 = scmp.ne.s32.totalorder %s66, %s67
    %p78 = scmp.eq.s32.totalorder %s16, 0
    %p79 = por %p77, %p78
    %p80 = scmp.ne.s32.totalorder %s66, %s67
    %p81 = scmp.eq.s32.totalorder %s17, 1
    %p82 = por %p80, %p81
    %p84 = scmp.ne.s32.totalorder %s67, %s83
    %p85 = scmp.eq.s32.totalorder %s17, 0
    %p86 = por %p84, %p85
    %s87 = ssub.s32 %s18, %s30
    %p88 = scmp.eq.s32.totalorder %s87, 0
    %s90 = sadd.s32 %s89, 1
    %s91 = scalar_select %p88, %s89, %s90
    %p94 = pneg %p88
    %p95 = scmp.eq.s32.totalorder %s11, 1
    %p96 = por %p94, %p95
    %p97 = scmp.ne.s32.totalorder %s89, %s92
    %p98 = scmp.eq.s32.totalorder %s11, 0
    %p99 = por %p97, %p98
    %p100 = scmp.ne.s32.totalorder %s89, %s92
    %p101 = scmp.eq.s32.totalorder %s16, 1
    %p102 = por %p100, %p101
    %p103 = scmp.ne.s32.totalorder %s92, %s93
    %p104 = scmp.eq.s32.totalorder %s16, 0
    %p105 = por %p103, %p104
    %p106 = scmp.ne.s32.totalorder %s92, %s93
    %p107 = scmp.eq.s32.totalorder %s17, 1
    %p108 = por %p106, %p107
    %p110 = scmp.ne.s32.totalorder %s93, %s109
    %p111 = scmp.eq.s32.totalorder %s17, 0
    %p112 = por %p110, %p111
    %s113 = ssub.s32 %s18, %s30
    %p114 = scmp.eq.s32.totalorder %s113, 0
    %s116 = sadd.s32 %s115, 1
    %s117 = scalar_select %p114, %s115, %s116
    %p120 = pneg %p114
    %p121 = scmp.eq.s32.totalorder %s11, 1
    %p122 = por %p120, %p121
    %p123 = scmp.ne.s32.totalorder %s115, %s118
    %p124 = scmp.eq.s32.totalorder %s11, 0
    %p125 = por %p123, %p124
    %p126 = scmp.ne.s32.totalorder %s115, %s118
    %p127 = scmp.eq.s32.totalorder %s16, 1
    %p128 = por %p126, %p127
    %p129 = scmp.ne.s32.totalorder %s118, %s119
    %p130 = scmp.eq.s32.totalorder %s16, 0
    %p131 = por %p129, %p130
    %p132 = scmp.ne.s32.totalorder %s118, %s119
    %p133 = scmp.eq.s32.totalorder %s17, 1
    %p134 = por %p132, %p133
    %p136 = scmp.ne.s32.totalorder %s119, %s135
    %p137 = scmp.eq.s32.totalorder %s17, 0
    %p138 = por %p136, %p137
    %s139 = ssub.s32 %s18, %s30
    %p140 = scmp.eq.s32.totalorder %s139, 0
    %s142 = sadd.s32 %s141, 1
    %s143 = scalar_select %p140, %s141, %s142
    %p146 = pneg %p140
    %p147 = scmp.eq.s32.totalorder %s11, 1
    %p148 = por %p146, %p147
    %p149 = scmp.ne.s32.totalorder %s141, %s144
    %p150 = scmp.eq.s32.totalorder %s11, 0
    %p151 = por %p149, %p150
    %p152 = scmp.ne.s32.totalorder %s141, %s144
    %p153 = scmp.eq.s32.totalorder %s16, 1
    %p154 = por %p152, %p153
    %p155 = scmp.ne.s32.totalorder %s144, %s145
    %p156 = scmp.eq.s32.totalorder %s16, 0
    %p157 = por %p155, %p156
    %p158 = scmp.ne.s32.totalorder %s144, %s145
    %p159 = scmp.eq.s32.totalorder %s17, 1
    %p160 = por %p158, %p159
    %p162 = scmp.ne.s32.totalorder %s145, %s161
    %p163 = scmp.eq.s32.totalorder %s17, 0
    %p164 = por %p162, %p163
    %p165 = scmp.le.s32.totalorder 1, %s11
    %p166 = scmp.lt.s32.totalorder %s11, 3
    %p167 = pnand %p165, %p166
    %p168 = pneg %p167
    // Predicated region
    $region9: #{tpu_custom_call.1} parent=5 // pred_check
      _
    $region10: #{tpu_custom_call.1} parent=5 // pred_check_branch
      %170 = sbr.rel (%p167) target = $region12
    $region11: #{tpu_custom_call.1} parent=5 // pred_region
      %s171 = ssub.s32 %s11, 1
    $region12: #{tpu_custom_call.1} parent=5 // pred_fallthru
      _
    %p172 = scmp.lt.s32.totalorder %s11, 2
    // Predicated region
    $region13: #{tpu_custom_call.1} parent=5 // pred_check
      %p173 = pneg %p172
    $region14: #{tpu_custom_call.1} parent=5 // pred_check_branch
      %175 = sbr.rel (%p173) target = $region16
    $region15: #{tpu_custom_call.1} parent=5 // pred_region
      // Predicated region
      $region17: #{tpu_custom_call.1} parent=15 // pred_check
        %p176 = pneg %p45
      $region18: #{tpu_custom_call.1} parent=15 // pred_check_branch
        %178 = sbr.rel (%p176) target = $region20
      $region19: #{tpu_custom_call.1} parent=15 // pred_region
        %s179 = smul.u32 2, %s19
        %p180 = scmp.lt.s32.totalorder %s18, 1
        %s181 = scalar_select %p180, %s18, 1
        %p182 = scmp.lt.s32.totalorder %s179, 1
        %s183 = scalar_select %p182, %s179, 1
        %s184 = smul.addr %s181, 4
        %s185 = sadd.s32 %s183, %s184
        %s186 = smul.addr %s185, 8
        %s187 = scalar_lea.vmem %s0, %s186
        %s188 = smul.u32 2, %s19
      $region20: #{tpu_custom_call.1} parent=15 // pred_fallthru
        _
      // Predicated region
      $region21: #{tpu_custom_call.1} parent=15 // pred_check
        %p189 = pneg %p73
      $region22: #{tpu_custom_call.1} parent=15 // pred_check_branch
        %191 = sbr.rel (%p189) target = $region24
      $region23: #{tpu_custom_call.1} parent=15 // pred_region
        %s192 = smul.u32 2, %s19
        %p193 = scmp.lt.s32.totalorder %s18, 1
        %s194 = scalar_select %p193, %s18, 1
        %p195 = scmp.lt.s32.totalorder %s192, 1
        %s196 = scalar_select %p195, %s192, 1
        %s197 = smul.addr %s194, 2
        %s198 = sadd.s32 %s196, %s197
        %s199 = scalar_lea.vmem %s1, %s198
        %s200 = smul.u32 2, %s19
      $region24: #{tpu_custom_call.1} parent=15 // pred_fallthru
        _
    $region16: #{tpu_custom_call.1} parent=5 // pred_fallthru
      _
    %p201 = scmp.le.s32.totalorder 1, %s11
    %p202 = scmp.lt.s32.totalorder %s11, 3
    %p203 = pnand %p201, %p202
    %p204 = pneg %p203
    // Predicated region
    $region25: #{tpu_custom_call.1} parent=5 // pred_check
      _
    $region26: #{tpu_custom_call.1} parent=5 // pred_check_branch
      %206 = sbr.rel (%p203) target = $region28
    $region27: #{tpu_custom_call.1} parent=5 // pred_region
      %s207 = ssub.s32 %s11, 1
      %s208 = smul.u32 2, %s21
      %p209 = scmp.lt.s32.totalorder %s20, 1
      %s210 = scalar_select %p209, %s20, 1
      %p211 = scmp.lt.s32.totalorder %s208, 1
      %s212 = scalar_select %p211, %s208, 1
      %s213 = smul.addr %s210, 4
      %s214 = sadd.s32 %s212, %s213
      %s215 = smul.addr %s214, 8
      %s216 = scalar_lea.vmem %s0, %s215
      %p217 = pneg %p51
      %p218 = pneg %p48
      %s219 = smul.u32 2, %s21
      %p220 = scmp.lt.s32.totalorder %s20, 1
      %s221 = scalar_select %p220, %s20, 1
      %p222 = scmp.lt.s32.totalorder %s219, 1
      %s223 = scalar_select %p222, %s219, 1
      %s224 = smul.addr %s221, 2
      %s225 = sadd.s32 %s223, %s224
      %s226 = scalar_lea.vmem %s1, %s225
      %p227 = pneg %p79
      %p228 = pneg %p76
      %p229 = pneg %p105
      %p230 = pneg %p102
      %p231 = scmp.lt.s32.totalorder %s20, 1
      %s232 = scalar_select %p231, %s20, 1
      %s233 = smul.addr %s232, 2
      %s234 = smul.addr %s233, 8
      %s235 = scalar_lea.vmem %s2, %s234
      %p236 = pneg %p131
      %p237 = pneg %p128
      %p238 = scmp.lt.s32.totalorder %s20, 1
      %s239 = scalar_select %p238, %s20, 1
      %s240 = smul.addr %s239, 2
      %s241 = smul.addr %s240, 8
      %s242 = scalar_lea.vmem %s3, %s241
      %p243 = pneg %p157
      %p244 = pneg %p154
      %p245 = scmp.lt.s32.totalorder %s20, 1
      %s246 = scalar_select %p245, %s20, 1
      %s247 = smul.addr %s246, 2
      %s248 = smul.addr %s247, 8
      %s249 = scalar_lea.vmem %s4, %s248
      %s250 = smul.u32 2, %s21
      %p251 = scmp.lt.s32.totalorder %s20, 1
      %s252 = scalar_select %p251, %s20, 1
      %p253 = scmp.lt.s32.totalorder %s250, 1
      %s254 = scalar_select %p253, %s250, 1
      %s255 = smul.addr %s252, 4
      %s256 = sadd.s32 %s254, %s255
      %s257 = smul.addr %s256, 8
      %s258 = scalar_lea.vmem %s0, %s257
      %s259 = smul.u32 2, %s21
      %s260 = smul.u32 2, %s21
      %p261 = scmp.lt.s32.totalorder %s20, 1
      %s262 = scalar_select %p261, %s20, 1
      %p263 = scmp.lt.s32.totalorder %s260, 1
      %s264 = scalar_select %p263, %s260, 1
      %s265 = smul.addr %s262, 2
      %s266 = sadd.s32 %s264, %s265
      %s267 = scalar_lea.vmem %s1, %s266
      %s268 = smul.u32 2, %s21
      %p269 = scmp.lt.s32.totalorder %s20, 1
      %s270 = scalar_select %p269, %s20, 1
      %s271 = smul.addr %s270, 2
      %s272 = smul.addr %s271, 8
      %s273 = scalar_lea.vmem %s2, %s272
      %p274 = scmp.lt.s32.totalorder %s20, 1
      %s275 = scalar_select %p274, %s20, 1
      %s276 = smul.addr %s275, 2
      %s277 = smul.addr %s276, 8
      %s278 = scalar_lea.vmem %s3, %s277
      %p279 = scmp.lt.s32.totalorder %s20, 1
      %s280 = scalar_select %p279, %s20, 1
      %s281 = smul.addr %s280, 2
      %s282 = smul.addr %s281, 8
      %s283 = scalar_lea.vmem %s4, %s282
      %p284 = scmp.eq.s32.totalorder %s21, 0
      // Predicated region
      $region29: #{tpu_custom_call.1} parent=27 // pred_check
        %p285 = pneg %p284
      $region30: #{tpu_custom_call.1} parent=27 // pred_check_branch
        %287 = sbr.rel (%p285) target = $region32
      $region31: #{tpu_custom_call.1} parent=27 // pred_region
        %vm288 = vcmask 7168
        %289 = vst.msk [vmem:[%s273] sm:$0xff] %vm288, 0.0
        %vm290 = vcmask 2048
        %291 = vst.msk [vmem:[%s273 + $0x8] sm:$0x7] %vm290, 0.0
        %292 = vst.msk [vmem:[%s278] sm:$0xff] %vm288, 0.0
        %293 = vst.msk [vmem:[%s278 + $0x8] sm:$0x7] %vm290, 0.0
        %294 = vst.msk [vmem:[%s283] sm:$0xff] %vm288, 0.0
        %295 = vst.msk [vmem:[%s283 + $0x8] sm:$0x7] %vm290, 0.0
      $region32: #{tpu_custom_call.1} parent=27 // pred_fallthru
        _
      %v296 = vld [vmem:[%s258] sm:$0xff]
      %v297 = vld [vmem:[%s258 + $0x8] sm:$0xff]
      %v298 = vld [vmem:[%s258 + $0x10] sm:$0x7]
      %v299 = vld [vmem:[%s258 + $0x18] sm:$0x7]
      %v300 = vld [vmem:[%s267] sm:$0x3]
      %vm301 = vcmask 1042432
      %v302 = vsel %vm301, %v298, -inf
      %v303 = vmax.f32 %v296, %v302
      %v304 = vrot.slane %v303, 4
      %v305 = vmax.f32 %v303, %v304
      %v306 = vrot.slane %v305, 2
      %v307 = vmax.f32 %v305, %v306
      %v308 = vrot.slane %v307, 1
      %v309 = vmax.f32 %v307, %v308
      %v310 = vsel %vm301, %v299, -inf
      %v311 = vmax.f32 %v297, %v310
      %v312 = vrot.slane %v311, 4
      %v313 = vmax.f32 %v311, %v312
      %v314 = vrot.slane %v313, 2
      %v315 = vmax.f32 %v313, %v314
      %v316 = vrot.slane %v315, 1
      %v317 = vmax.f32 %v315, %v316
      %v318 = vsub.f32 %v296, %v309
      %v319 = vsub.f32 %v297, %v317
      %v320 = vsub.f32 %v298, %v309
      %v321 = vsub.f32 %v299, %v317
      %v322 = vmul.f32 %v318, 1.442695
      %v323 = vpow.pop %v322
      %v324 = vmul.f32 %v319, 1.442695
      %v325 = vpow.pop %v324
      %v326 = vmul.f32 %v320, 1.442695
      %v327 = vpow.pop %v326
      %v328 = vmul.f32 %v321, 1.442695
      %v329 = vpow.pop %v328
      %v330 = vsel %vm301, %v327, 0.0
      %v331 = vadd.f32 %v323, %v330
      %v332 = vrot.slane %v331, 4
      %v333 = vadd.f32 %v331, %v332
      %v334 = vrot.slane %v333, 2
      %v335 = vadd.f32 %v333, %v334
      %v336 = vrot.slane %v335, 1
      %v337 = vadd.f32 %v335, %v336
      %v338 = vsel %vm301, %v329, 0.0
      %v339 = vadd.f32 %v325, %v338
      %v340 = vrot.slane %v339, 4
      %v341 = vadd.f32 %v339, %v340
      %v342 = vrot.slane %v341, 2
      %v343 = vadd.f32 %v341, %v342
      %v344 = vrot.slane %v343, 1
      %v345 = vadd.f32 %v343, %v344
      %v346 = vrcp.pop %v337
      %v347 = vrcp.pop %v345
      %v348 = vmul.f32 %v323, %v346
      %v349 = vmul.f32 %v325, %v347
      %v350 = vmul.f32 %v327, %v346
      %v351 = vmul.f32 %v329, %v347
      %v352 = vlaneseq
      %v353 = vshrl.u32 %v352, 7
      %v354 = vadd.s32 %v353, 8
      %v355 = vlaneseq
      %v356 = vshrl.u32 %v355, 7
      %v357 = vsub.s32 0, %v356
      %v358 = vrot.slane %v300, %v357
      %v359 = vlaneseq
      %v360 = vshrl.u32 %v359, 7
      %v361 = vsub.s32 1, %v360
      %v362 = vrot.slane %v300, %v361
      %vm363 = vcmp.eq.s32.totalorder %v358, %v353
      %vm364 = vcmp.eq.s32.totalorder %v362, %v353
      %vm365 = vcmp.eq.s32.totalorder %v358, %v354
      %vm366 = vcmp.eq.s32.totalorder %v362, %v354
      %v367 = vsel %vm363, 1, 0
      %v368 = vsel %vm364, 1, 0
      %v369 = vsel %vm365, 1, 0
      %v370 = vsel %vm366, 1, 0
      %v371 = vcvt.s32.f32 %v367
      %v372 = vcvt.s32.f32 %v368
      %v373 = vcvt.s32.f32 %v369
      %v374 = vcvt.s32.f32 %v370
      %v375 = vld [vmem:[%s273] sm:$0xff]
      %v376 = vld [vmem:[%s273 + $0x8] sm:$0x7]
      %v377 = vmul.f32 %v348, %v371
      %v378 = vmul.f32 %v349, %v372
      %v379 = vmul.f32 %v350, %v373
      %v380 = vmul.f32 %v351, %v374
      %v381 = vadd.f32 %v377, %v378
      %382 = vadd.xlane.f32.xlu0 %v381
      %v383 = vpop.xlane.xlu0 %382
      %v384 = vsel %vm301, %v379, 0.0
      %v385 = vsel %vm301, %v380, 0.0
      %v386 = vadd.f32 %v384, %v385
      %387 = vadd.xlane.f32.xlu0 %v386
      %v388 = vpop.xlane.xlu0 %387
      %v389 = vadd.f32 %v375, %v383
      %v390 = vadd.f32 %v376, %v388
      %vm391 = vcmask 7168
      %392 = vst.msk [vmem:[%s273] sm:$0xff] %vm391, %v389
      %vm393 = vcmask 2048
      %394 = vst.msk [vmem:[%s273 + $0x8] sm:$0x7] %vm393, %v390
      %v395 = vld [vmem:[%s278] sm:$0xff]
      %v396 = vld [vmem:[%s278 + $0x8] sm:$0x7]
      %v397 = vadd.f32 %v371, %v372
      %398 = vadd.xlane.f32.xlu0 %v397
      %v399 = vpop.xlane.xlu0 %398
      %v400 = vsel %vm301, %v373, 0.0
      %v401 = vsel %vm301, %v374, 0.0
      %v402 = vadd.f32 %v400, %v401
      %403 = vadd.xlane.f32.xlu0 %v402
      %v404 = vpop.xlane.xlu0 %403
      %v405 = vadd.f32 %v395, %v399
      %v406 = vadd.f32 %v396, %v404
      %407 = vst.msk [vmem:[%s278] sm:$0xff] %vm391, %v405
      %408 = vst.msk [vmem:[%s278 + $0x8] sm:$0x7] %vm393, %v406
      %v409 = vld [vmem:[%s283] sm:$0xff]
      %v410 = vld [vmem:[%s283 + $0x8] sm:$0x7]
      %v411 = vmul.f32 %v348, %v348
      %v412 = vmul.f32 %v349, %v349
      %v413 = vmul.f32 %v350, %v350
      %v414 = vmul.f32 %v351, %v351
      %v415 = vadd.f32 %v411, %v412
      %416 = vadd.xlane.f32.xlu0 %v415
      %v417 = vpop.xlane.xlu0 %416
      %v418 = vsel %vm301, %v413, 0.0
      %v419 = vsel %vm301, %v414, 0.0
      %v420 = vadd.f32 %v418, %v419
      %421 = vadd.xlane.f32.xlu0 %v420
      %v422 = vpop.xlane.xlu0 %421
      %v423 = vadd.f32 %v409, %v417
      %v424 = vadd.f32 %v410, %v422
      %425 = vst.msk [vmem:[%s283] sm:$0xff] %vm391, %v423
      %426 = vst.msk [vmem:[%s283 + $0x8] sm:$0x7] %vm393, %v424
      %p427 = scmp.lt.s32.totalorder %s20, 1
      %s428 = scalar_select %p427, %s20, 1
      %s429 = smul.addr %s428, 2
      %s430 = smul.addr %s429, 8
      %s431 = scalar_lea.vmem %s2, %s430
      %p432 = scmp.lt.s32.totalorder %s20, 1
      %s433 = scalar_select %p432, %s20, 1
      %s434 = smul.addr %s433, 2
      %s435 = smul.addr %s434, 8
      %s436 = scalar_lea.vmem %s3, %s435
      %p437 = scmp.lt.s32.totalorder %s20, 1
      %s438 = scalar_select %p437, %s20, 1
      %s439 = smul.addr %s438, 2
      %s440 = smul.addr %s439, 8
      %s441 = scalar_lea.vmem %s4, %s440
      // Predicated region
      $region33: #{tpu_custom_call.1} parent=27 // pred_check
        %p442 = pneg %p102
      $region34: #{tpu_custom_call.1} parent=27 // pred_check_branch
        %444 = sbr.rel (%p442) target = $region36
      $region35: #{tpu_custom_call.1} parent=27 // pred_region
        _
      $region36: #{tpu_custom_call.1} parent=27 // pred_fallthru
        _
      // Predicated region
      $region37: #{tpu_custom_call.1} parent=27 // pred_check
        %p445 = pneg %p128
      $region38: #{tpu_custom_call.1} parent=27 // pred_check_branch
        %447 = sbr.rel (%p445) target = $region40
      $region39: #{tpu_custom_call.1} parent=27 // pred_region
        _
      $region40: #{tpu_custom_call.1} parent=27 // pred_fallthru
        _
      // Predicated region
      $region41: #{tpu_custom_call.1} parent=27 // pred_check
        %p448 = pneg %p154
      $region42: #{tpu_custom_call.1} parent=27 // pred_check_branch
        %450 = sbr.rel (%p448) target = $region44
      $region43: #{tpu_custom_call.1} parent=27 // pred_region
        _
      $region44: #{tpu_custom_call.1} parent=27 // pred_fallthru
        _
    $region28: #{tpu_custom_call.1} parent=5 // pred_fallthru
      _
    %p451 = scmp.le.s32.totalorder 2, %s11
    // Predicated region
    $region45: #{tpu_custom_call.1} parent=5 // pred_check
      %p452 = pneg %p451
    $region46: #{tpu_custom_call.1} parent=5 // pred_check_branch
      %454 = sbr.rel (%p452) target = $region48
    $region47: #{tpu_custom_call.1} parent=5 // pred_region
      %s455 = ssub.s32 %s11, 2
      // Predicated region
      $region49: #{tpu_custom_call.1} parent=47 // pred_check
        %p456 = pneg %p108
      $region50: #{tpu_custom_call.1} parent=47 // pred_check_branch
        %458 = sbr.rel (%p456) target = $region52
      $region51: #{tpu_custom_call.1} parent=47 // pred_region
        %p459 = scmp.lt.s32.totalorder %s22, 1
        %s460 = scalar_select %p459, %s22, 1
        %s461 = smul.addr %s460, 2
        %s462 = smul.addr %s461, 8
        %s463 = scalar_lea.vmem %s2, %s462
      $region52: #{tpu_custom_call.1} parent=47 // pred_fallthru
        _
      // Predicated region
      $region53: #{tpu_custom_call.1} parent=47 // pred_check
        %p464 = pneg %p134
      $region54: #{tpu_custom_call.1} parent=47 // pred_check_branch
        %466 = sbr.rel (%p464) target = $region56
      $region55: #{tpu_custom_call.1} parent=47 // pred_region
        %p467 = scmp.lt.s32.totalorder %s22, 1
        %s468 = scalar_select %p467, %s22, 1
        %s469 = smul.addr %s468, 2
        %s470 = smul.addr %s469, 8
        %s471 = scalar_lea.vmem %s3, %s470
      $region56: #{tpu_custom_call.1} parent=47 // pred_fallthru
        _
      // Predicated region
      $region57: #{tpu_custom_call.1} parent=47 // pred_check
        %p472 = pneg %p160
      $region58: #{tpu_custom_call.1} parent=47 // pred_check_branch
        %474 = sbr.rel (%p472) target = $region60
      $region59: #{tpu_custom_call.1} parent=47 // pred_region
        %p475 = scmp.lt.s32.totalorder %s22, 1
        %s476 = scalar_select %p475, %s22, 1
        %s477 = smul.addr %s476, 2
        %s478 = smul.addr %s477, 8
        %s479 = scalar_lea.vmem %s4, %s478
      $region60: #{tpu_custom_call.1} parent=47 // pred_fallthru
        _
    $region48: #{tpu_custom_call.1} parent=5 // pred_fallthru
      _
  $region6: #{tpu_custom_call.1} parent=0 // loop_footer
    %s15 = sadd.s32 1, %s11
  $region7: #{tpu_custom_call.1} parent=0 // loop_footer_branch
    %10 = sbr.rel target = $region3
  $region8: #{tpu_custom_call.1} parent=0 // loop_exit
    _

</llo_original>
